<compile_context>
chip_gen: v5e
topology: v5e:2x2
jax: 0.10.0
libtpu: 0.0.40
codegen_flags: <defaults>
</compile_context>

<pallas_src>
import functools
import math

import jax
import jax.numpy as jnp
from jax.experimental import pallas as pl
from jax.experimental.pallas import tpu as pltpu


# ----------------------------------------------------------------------------
# Pallas kernels
# ----------------------------------------------------------------------------
def layernorm_kernel(x_ref, g_ref, b_ref, o_ref, *, eps):
    """Y = LayerNorm(X) * gamma + beta over the last dim (no residual)."""
    x = x_ref[...]
    mu = jnp.mean(x, axis=-1, keepdims=True)
    var = jnp.mean((x - mu) * (x - mu), axis=-1, keepdims=True)
    o_ref[...] = (x - mu) * jax.lax.rsqrt(var + eps) * g_ref[...] + b_ref[...]


def attn_block_kernel(h_ref, wqkv_ref, bqkv_ref, wo_ref, bo_ref,
                      g_ref, beta_ref, mask_ref, o_ref,
                      *, n_heads, scale, eps):
    """Fused self-attention block for one batch element.

    h block: [1, S, H]; wqkv: [H, 3H]; wo: [H, H]; mask bias: [1, 1, S].
    Output: LayerNorm(h + SelfAttention(h)).
    """
    x = h_ref[0]                                        # [S, H]  f32
    S, H = x.shape
    Dh = H // n_heads

    # Fused QKV projection (bf16 MXU, f32 accumulate).
    qkv = jnp.dot(x.astype(jnp.bfloat16),
                  wqkv_ref[...].astype(jnp.bfloat16),
                  preferred_element_type=jnp.float32) + bqkv_ref[...]   # [S, 3H]

    mask = mask_ref[0]                                  # [1, S] (0 or -1e4)

    ctx_parts = []
    for hh in range(n_heads):                           # static unroll (tiny)
        qh = qkv[:, hh * Dh:(hh + 1) * Dh]              # [S, Dh]
        kh = qkv[:, H + hh * Dh:H + (hh + 1) * Dh]
        vh = qkv[:, 2 * H + hh * Dh:2 * H + (hh + 1) * Dh]

        s = jnp.einsum("qd,kd->qk",
                       qh.astype(jnp.bfloat16), kh.astype(jnp.bfloat16),
                       preferred_element_type=jnp.float32) * scale      # [S, S]
        s = s + mask                                    # broadcast over queries
        m = jnp.max(s, axis=-1, keepdims=True)
        e = jnp.exp(s - m)
        p = e * pl.reciprocal(jnp.sum(e, axis=-1, keepdims=True), approx=True)
        ctx_parts.append(
            jnp.einsum("qk,kd->qd",
                       p.astype(jnp.bfloat16), vh.astype(jnp.bfloat16),
                       preferred_element_type=jnp.float32))             # [S, Dh]

    ctx = jnp.concatenate(ctx_parts, axis=-1)           # [S, H]

    attn_out = jnp.dot(ctx.astype(jnp.bfloat16),
                       wo_ref[...].astype(jnp.bfloat16),
                       preferred_element_type=jnp.float32) + bo_ref[...]

    # Residual + LayerNorm (f32).
    y = x + attn_out
    mu = jnp.mean(y, axis=-1, keepdims=True)
    var = jnp.mean((y - mu) * (y - mu), axis=-1, keepdims=True)
    o_ref[0] = (y - mu) * jax.lax.rsqrt(var + eps) * g_ref[...] + beta_ref[...]


def ffn_block_kernel(x_ref, w1_ref, b1_ref, w2_ref, b2_ref,
                     g_ref, beta_ref, o_ref, *, eps):
    """Fused FFN block: LayerNorm(x + W2 @ GELU(W1 @ x))."""
    x = x_ref[...]                                      # [tm, H] f32

    inter = jnp.dot(x.astype(jnp.bfloat16),
                    w1_ref[...].astype(jnp.bfloat16),
                    preferred_element_type=jnp.float32) + b1_ref[...]   # [tm, I]
    # exact (erf) GELU, as in BERT / torch nn.GELU — kept in f32
    inter = 0.5 * inter * (1.0 + jax.lax.erf(inter * (1.0 / math.sqrt(2.0))))

    ffn = jnp.dot(inter.astype(jnp.bfloat16),
                  w2_ref[...].astype(jnp.bfloat16),
                  preferred_element_type=jnp.float32) + b2_ref[...]     # [tm, H]

    y = x + ffn
    mu = jnp.mean(y, axis=-1, keepdims=True)
    var = jnp.mean((y - mu) * (y - mu), axis=-1, keepdims=True)
    o_ref[...] = (y - mu) * jax.lax.rsqrt(var + eps) * g_ref[...] + beta_ref[...]


def pooler_head_kernel(cls_ref, pw_ref, pb_ref, ow_ref, ob_ref, o_ref):
    """pooled = tanh(cls @ Wp + bp); logits_pad = pooled @ Wo_pad + bo_pad.

    Classifier weight is zero-padded to a 128-wide lane-dense slab; the real
    logits are sliced outside the kernel.  Dropout(p=0.3) is eval-mode
    identity between the two matmuls.
    """
    pooled = jnp.tanh(jnp.dot(cls_ref[...].astype(jnp.bfloat16),
                              pw_ref[...].astype(jnp.bfloat16),
                              preferred_element_type=jnp.float32) + pb_ref[...])
    o_ref[...] = jnp.dot(pooled.astype(jnp.bfloat16),
                         ow_ref[...].astype(jnp.bfloat16),
                         preferred_element_type=jnp.float32) + ob_ref[...]


# ----------------------------------------------------------------------------
# Pallas wrappers
# ----------------------------------------------------------------------------
def layernorm(x, gamma, beta, eps=1e-12, tm=8):
    M, H = x.shape
    return pl.pallas_call(
        functools.partial(layernorm_kernel, eps=eps),
        out_shape=jax.ShapeDtypeStruct((M, H), jnp.float32),
        grid=(M // tm,),
        in_specs=[pl.BlockSpec((tm, H), lambda i: (i, 0)),
                  pl.BlockSpec((1, H), lambda i: (0, 0)),
                  pl.BlockSpec((1, H), lambda i: (0, 0))],
        out_specs=pl.BlockSpec((tm, H), lambda i: (i, 0)),
        compiler_params=pltpu.CompilerParams(
            dimension_semantics=("parallel",)),
    )(x, gamma.reshape(1, H), beta.reshape(1, H))


def attention_block(h, mask_bias, wqkv, bqkv, wo, bo, gamma, beta,
                    n_heads, eps=1e-12):
    B, S, H = h.shape
    scale = 1.0 / math.sqrt(H // n_heads)
    return pl.pallas_call(
        functools.partial(attn_block_kernel, n_heads=n_heads,
                          scale=scale, eps=eps),
        out_shape=jax.ShapeDtypeStruct((B, S, H), jnp.float32),
        grid=(B,),
        in_specs=[
            pl.BlockSpec((1, S, H), lambda b: (b, 0, 0)),
            pl.BlockSpec((H, 3 * H), lambda b: (0, 0)),
            pl.BlockSpec((1, 3 * H), lambda b: (0, 0)),
            pl.BlockSpec((H, H), lambda b: (0, 0)),
            pl.BlockSpec((1, H), lambda b: (0, 0)),
            pl.BlockSpec((1, H), lambda b: (0, 0)),
            pl.BlockSpec((1, H), lambda b: (0, 0)),
            pl.BlockSpec((1, 1, S), lambda b: (b, 0, 0)),
        ],
        out_specs=pl.BlockSpec((1, S, H), lambda b: (b, 0, 0)),
        compiler_params=pltpu.CompilerParams(
            dimension_semantics=("parallel",)),
    )(h, wqkv, bqkv.reshape(1, 3 * H), wo, bo.reshape(1, H),
      gamma.reshape(1, H), beta.reshape(1, H), mask_bias)


def ffn_block(x, w1, b1, w2, b2, gamma, beta, eps=1e-12, tm=8):
    M, H = x.shape
    I = w1.shape[1]
    return pl.pallas_call(
        functools.partial(ffn_block_kernel, eps=eps),
        out_shape=jax.ShapeDtypeStruct((M, H), jnp.float32),
        grid=(M // tm,),
        in_specs=[pl.BlockSpec((tm, H), lambda i: (i, 0)),
                  pl.BlockSpec((H, I), lambda i: (0, 0)),
                  pl.BlockSpec((1, I), lambda i: (0, 0)),
                  pl.BlockSpec((I, H), lambda i: (0, 0)),
                  pl.BlockSpec((1, H), lambda i: (0, 0)),
                  pl.BlockSpec((1, H), lambda i: (0, 0)),
                  pl.BlockSpec((1, H), lambda i: (0, 0))],
        out_specs=pl.BlockSpec((tm, H), lambda i: (i, 0)),
        compiler_params=pltpu.CompilerParams(
            dimension_semantics=("parallel",)),
    )(x, w1, b1.reshape(1, I), w2, b2.reshape(1, H),
      gamma.reshape(1, H), beta.reshape(1, H))


def pooler_head(cls_tok, pool_w, pool_b, out_w_pad, out_b_pad):
    B, H = cls_tok.shape
    NP = out_w_pad.shape[1]
    return pl.pallas_call(
        pooler_head_kernel,
        out_shape=jax.ShapeDtypeStruct((B, NP), jnp.float32),
    )(cls_tok, pool_w, pool_b.reshape(1, H), out_w_pad, out_b_pad.reshape(1, NP))


# ----------------------------------------------------------------------------
# Synthetic deterministic BERT-like config & parameters (lane-dense dims)
# ----------------------------------------------------------------------------
CFG = dict(vocab=100, max_pos=16, type_vocab=2, hidden=128, heads=2,
           layers=2, intermediate=512, n_classes=3, n_classes_pad=128)


def init_params(cfg):
    key = jax.random.PRNGKey(0)
    idx = [0]

    def nxt(shape, scale=0.02):
        idx[0] += 1
        return (scale * jax.random.normal(jax.random.fold_in(key, idx[0]),
                                          shape)).astype(jnp.float32)

    H, I = cfg["hidden"], cfg["intermediate"]
    NC, NP = cfg["n_classes"], cfg["n_classes_pad"]

    out_w = nxt((H, NC))
    out_w_pad = jnp.zeros((H, NP), jnp.float32).at[:, :NC].set(out_w)
    out_b_pad = jnp.zeros((NP,), jnp.float32)

    p = {
        "word_emb": nxt((cfg["vocab"], H)),
        "pos_emb": nxt((cfg["max_pos"], H)),
        "type_emb": nxt((cfg["type_vocab"], H)),
        "emb_ln_g": jnp.ones((H,), jnp.float32),
        "emb_ln_b": jnp.zeros((H,), jnp.float32),
        "pool_w": nxt((H, H)), "pool_b": jnp.zeros((H,), jnp.float32),
        "out_w_pad": out_w_pad, "out_b_pad": out_b_pad,
        "layers": [],
    }
    for _ in range(cfg["layers"]):
        p["layers"].append({
            "wqkv": nxt((H, 3 * H)),                      # fused q|k|v weights
            "bqkv": jnp.zeros((3 * H,), jnp.float32),
            "wo": nxt((H, H)), "bo": jnp.zeros((H,), jnp.float32),
            "ln1_g": jnp.ones((H,), jnp.float32),
            "ln1_b": jnp.zeros((H,), jnp.float32),
            "w1": nxt((H, I)), "b1": jnp.zeros((I,), jnp.float32),
            "w2": nxt((I, H)), "b2": jnp.zeros((H,), jnp.float32),
            "ln2_g": jnp.ones((H,), jnp.float32),
            "ln2_b": jnp.zeros((H,), jnp.float32),
        })
    return p


# ----------------------------------------------------------------------------
# Forward pass (gathers / reshapes as glue, everything heavy in fused kernels)
# ----------------------------------------------------------------------------
def classifier_forward(params, input_ids, attention_mask, cfg=CFG):
    B, S = input_ids.shape
    H, nH = cfg["hidden"], cfg["heads"]
    M = B * S

    # --- embeddings (gather = glue); token_type_ids assumed 0 ----------------
    emb = (jnp.take(params["word_emb"], input_ids, axis=0)
           + params["pos_emb"][None, :S, :]
           + params["type_emb"][0][None, None, :])                # [B, S, H]
    h = layernorm(emb.reshape(M, H),
                  params["emb_ln_g"], params["emb_ln_b"]).reshape(B, S, H)

    # --- additive attention mask bias ----------------------------------------
    mask_bias = ((1.0 - attention_mask.astype(jnp.float32)) * -10000.0
                 ).reshape(B, 1, S)

    # --- transformer layers (2 fused kernels per layer) -----------------------
    for lyr in params["layers"]:
        h = attention_block(h, mask_bias, lyr["wqkv"], lyr["bqkv"],
                            lyr["wo"], lyr["bo"], lyr["ln1_g"], lyr["ln1_b"],
                            n_heads=nH)
        h = ffn_block(h.reshape(M, H), lyr["w1"], lyr["b1"],
                      lyr["w2"], lyr["b2"], lyr["ln2_g"], lyr["ln2_b"]
                      ).reshape(B, S, H)

    # --- pooler (tanh on [CLS]) + dropout(eval) + classifier head -------------
    cls_tok = h[:, 0, :]                                           # [B, H]
    logits_pad = pooler_head(cls_tok, params["pool_w"], params["pool_b"],
                             params["out_w_pad"], params["out_b_pad"])
    return logits_pad[:, :cfg["n_classes"]]                        # [B, 3]


# ----------------------------------------------------------------------------
if __name__ == "__main__":
    cfg = CFG
    params = init_params(cfg)

    key = jax.random.PRNGKey(0)
    k_ids, k_msk = jax.random.split(key)
    B, S = 2, 8
    input_ids = jax.random.randint(k_ids, (B, S), 0, cfg["vocab"],
                                   dtype=jnp.int32)
    # first 6 tokens valid, last 2 padded (exercises the mask bias)
    attention_mask = jnp.concatenate(
        [jnp.ones((B, 6), jnp.int32), jnp.zeros((B, 2), jnp.int32)], axis=1)

    logits = classifier_forward(params, input_ids, attention_mask, cfg)
    jax.block_until_ready(logits)
    assert logits.shape == (B, cfg["n_classes"])
    assert bool(jnp.all(jnp.isfinite(logits)))
    print("KERNEL_OK")
</pallas_src>

<mosaic_0001>
module attributes {stable_mosaic.version = 11 : i64} {
  func.func @layernorm_kernel(%arg0: i32, %arg1: memref<8x128xf32, #tpu.memory_space<vmem>>, %arg2: memref<1x128xf32, #tpu.memory_space<vmem>>, %arg3: memref<1x128xf32, #tpu.memory_space<vmem>>, %arg4: memref<8x128xf32, #tpu.memory_space<vmem>>) attributes {dimension_semantics = [#tpu.dimension_semantics<parallel>], iteration_bounds = array<i64: 2>, scalar_prefetch = 0 : i64, scratch_operands = 0 : i64, tpu.core_type = #tpu.core_type<tc>, window_params = [{transform_indices = @transform_0, window_bounds = array<i64: 8, 128>}, {pipeline_mode = #tpu.pipeline_mode<synchronous>, transform_indices = @transform_1, window_bounds = array<i64: 1, 128>}, {pipeline_mode = #tpu.pipeline_mode<synchronous>, transform_indices = @transform_2, window_bounds = array<i64: 1, 128>}, {transform_indices = @transform_3, window_bounds = array<i64: 8, 128>}]} {
    %c0 = arith.constant 0 : index
    %c0_0 = arith.constant 0 : index
    %0 = vector.load %arg1[%c0, %c0_0] : memref<8x128xf32, #tpu.memory_space<vmem>>, vector<8x128xf32>
    %cst = arith.constant dense<0.000000e+00> : vector<8xf32>
    %1 = vector.multi_reduction <add>, %0, %cst [1] : vector<8x128xf32> to vector<8xf32>
    %2 = vector.shape_cast %1 : vector<8xf32> to vector<8x1xf32>
    %cst_1 = arith.constant 1.280000e+02 : f32
    %3 = vector.broadcast %cst_1 : f32 to vector<8x1xf32>
    %4 = arith.divf %2, %3 : vector<8x1xf32>
    %5 = vector.broadcast %4 : vector<8x1xf32> to vector<8x128xf32>
    %6 = arith.subf %0, %5 : vector<8x128xf32>
    %7 = vector.broadcast %4 : vector<8x1xf32> to vector<8x128xf32>
    %8 = arith.subf %0, %7 : vector<8x128xf32>
    %9 = arith.mulf %6, %8 : vector<8x128xf32>
    %cst_2 = arith.constant dense<0.000000e+00> : vector<8xf32>
    %10 = vector.multi_reduction <add>, %9, %cst_2 [1] : vector<8x128xf32> to vector<8xf32>
    %11 = vector.shape_cast %10 : vector<8xf32> to vector<8x1xf32>
    %cst_3 = arith.constant 1.280000e+02 : f32
    %12 = vector.broadcast %cst_3 : f32 to vector<8x1xf32>
    %13 = arith.divf %11, %12 : vector<8x1xf32>
    %14 = vector.broadcast %4 : vector<8x1xf32> to vector<8x128xf32>
    %15 = arith.subf %0, %14 : vector<8x128xf32>
    %cst_4 = arith.constant 9.99999996E-13 : f32
    %16 = vector.broadcast %cst_4 : f32 to vector<8x1xf32>
    %17 = arith.addf %13, %16 : vector<8x1xf32>
    %18 = math.rsqrt %17 : vector<8x1xf32>
    %19 = vector.broadcast %18 : vector<8x1xf32> to vector<8x128xf32>
    %20 = arith.mulf %15, %19 : vector<8x128xf32>
    %c0_5 = arith.constant 0 : index
    %c0_6 = arith.constant 0 : index
    %21 = vector.load %arg2[%c0_5, %c0_6] : memref<1x128xf32, #tpu.memory_space<vmem>>, vector<1x128xf32>
    %22 = vector.broadcast %21 : vector<1x128xf32> to vector<8x128xf32>
    %23 = arith.mulf %20, %22 : vector<8x128xf32>
    %c0_7 = arith.constant 0 : index
    %c0_8 = arith.constant 0 : index
    %24 = vector.load %arg3[%c0_7, %c0_8] : memref<1x128xf32, #tpu.memory_space<vmem>>, vector<1x128xf32>
    %25 = vector.broadcast %24 : vector<1x128xf32> to vector<8x128xf32>
    %26 = arith.addf %23, %25 : vector<8x128xf32>
    %c0_9 = arith.constant 0 : index
    %c0_10 = arith.constant 0 : index
    %27 = vector.load %arg4[%c0_9, %c0_10] : memref<8x128xf32, #tpu.memory_space<vmem>>, vector<8x128xf32>
    tpu.vector_store %arg4[%c0_9, %c0_10], %26 {strides = array<i32>} : memref<8x128xf32, #tpu.memory_space<vmem>>, vector<8x128xf32>,
    return
  }
  func.func @transform_0(%arg0: i32) -> (i32, i32) {
    %c0_i32 = arith.constant 0 : i32
    %c0_i32_0 = arith.constant 0 : i32
    return %arg0, %c0_i32 : i32, i32
  }
  func.func @transform_1(%arg0: i32) -> (i32, i32) {
    %c0_i32 = arith.constant 0 : i32
    %c0_i32_0 = arith.constant 0 : i32
    %c0_i32_1 = arith.constant 0 : i32
    return %c0_i32, %c0_i32_0 : i32, i32
  }
  func.func @transform_2(%arg0: i32) -> (i32, i32) {
    %c0_i32 = arith.constant 0 : i32
    %c0_i32_0 = arith.constant 0 : i32
    %c0_i32_1 = arith.constant 0 : i32
    return %c0_i32, %c0_i32_0 : i32, i32
  }
  func.func @transform_3(%arg0: i32) -> (i32, i32) {
    %c0_i32 = arith.constant 0 : i32
    %c0_i32_0 = arith.constant 0 : i32
    return %arg0, %c0_i32 : i32, i32
  }
}

</mosaic_0001>

<llo_original>
// kernel: tpu_custom_call.1
$region0: #{tpu_custom_call.1}
  #allocation0 [shape = 'u32[]', space=smem, size = 0x4, offset = 0x4, fixed_abs, tag = 'smem constant byte address 0x4 - core index']
  #allocation1 [shape = 'u32[72,128]{1,0:T(1,128)}', space=vmem, size = 0x9000, scoped, tag = 'internal scratch']
  %s0 = inlined_call_operand.hbm [shape: f32[16,128], index: 0, kind: input, shape index: {}]
  %s1 = inlined_call_operand.hbm [shape: f32[1,128], index: 1, kind: input, shape index: {}]
  %s2 = inlined_call_operand.vmem [shape: f32[1,128], index: 2, kind: input, shape index: {}]
  %s3 = inlined_call_operand.hbm [shape: f32[16,128], index: 3, kind: output, shape index: {}]
  %s4 = sld [smem:[#allocation0]]
  $region53: #{tpu_custom_call.1} parent=0
    _
  %s6 = ssub.s32 1, %s4
  %s7 = scalar_select 0, %s6, %s4
  $region1: #{tpu_custom_call.1} parent=0
    #allocation2 [shape = 'u8[8192]{0}', space=vmem, size = 0x2000, scoped, tag = 'input window, operand 0']
    #allocation3 [shape = 's32[2]{0}', space=sflag, size = 0x8, scoped, tag = 'scoped memory for tpu_custom_call.1']
    #allocation4 [shape = 's32[2]{0}', space=sflag, size = 0x8, scoped, tag = 'scoped memory for tpu_custom_call.1']
    #allocation5 [shape = 'u8[512]{0}', space=vmem, size = 0x400, scoped, tag = 'input window, operand 1, single buffered']
    #allocation6 [shape = 's32[1]{0}', space=sflag, size = 0x4, scoped, tag = 'scoped memory for tpu_custom_call.1']
    #allocation7 [shape = 'u8[8192]{0}', space=vmem, size = 0x2000, scoped, tag = 'output window, operand 0']
    %8 = vsyncpa [#allocation3], 0
    %s9 = scalar_lea.sflag [#allocation3], 1
    %10 = vsyncpa %s9, 0
    %11 = vsyncpa [#allocation6], 0
    %12 = vsyncpa [#allocation4], 0
    %s13 = scalar_lea.sflag [#allocation4], 1
    %14 = vsyncpa %s13, 0
    loop: start=0, step=1, limit=4
    $region2: #{tpu_custom_call.1} parent=1 // loop_pre_header
      _
    $region3: #{tpu_custom_call.1} parent=1 // loop_header
      %s16 = sphi 0, %s20
      %p17 = scmp.ge.s32.totalorder %s16, 4
      %s26 = sphi 0, %s28
      %s29 = sphi 0, %s26
      %s30 = sphi 0, %s29
      %s46 = sphi 0, %s30
      %s50 = sphi 0, %s50
      %s52 = sphi 0, %s50
      %s53 = sphi 0, %s52
      %s67 = sphi 0, %s53
      %s71 = sphi 0, %s71
      %s73 = sphi 0, %s71
      %s74 = sphi 0, %s73
      %s88 = sphi 0, %s74
      %s94 = sphi 0, %s96
      %s97 = sphi 0, %s94
      %s98 = sphi 0, %s97
      %s114 = sphi 0, %s98
    $region4: #{tpu_custom_call.1} parent=1 // loop_header_branch
      %19 = sbr.rel (%p17) target = $region8
    $region5: #{tpu_custom_call.1} parent=1 // loop_body
      %s21 = ssub.s32 %s16, 1
      %s22 = ssub.s32 %s16, 2
      %s23 = sadd.s32 %s16, 1
      %s24 = ssub.s32 %s16, %s23
      %p25 = scmp.eq.s32.totalorder %s24, 0
      %s27 = sadd.s32 %s26, 1
      %s28 = scalar_select %p25, %s26, %s27
      %p31 = pneg %p25
      %p32 = scmp.eq.s32.totalorder %s16, 1
      %p33 = por %p31, %p32
      %p34 = scmp.ne.s32.totalorder %s26, %s29
      %p35 = scmp.eq.s32.totalorder %s16, 0
      %p36 = por %p34, %p35
      %p37 = scmp.ne.s32.totalorder %s26, %s29
      %p38 = scmp.eq.s32.totalorder %s21, 1
      %p39 = por %p37, %p38
      %p40 = scmp.ne.s32.totalorder %s29, %s30
      %p41 = scmp.eq.s32.totalorder %s21, 0
      %p42 = por %p40, %p41
      %p43 = scmp.ne.s32.totalorder %s29, %s30
      %p44 = scmp.eq.s32.totalorder %s22, 1
      %p45 = por %p43, %p44
      %p47 = scmp.ne.s32.totalorder %s30, %s46
      %p48 = scmp.eq.s32.totalorder %s22, 0
      %p49 = por %p47, %p48
      %s51 = sadd.s32 %s50, 1
      %p54 = scmp.eq.s32.totalorder %s16, 1
      %p55 = scmp.ne.s32.totalorder %s50, %s52
      %p56 = scmp.eq.s32.totalorder %s16, 0
      %p57 = por %p55, %p56
      %p58 = scmp.ne.s32.totalorder %s50, %s52
      %p59 = scmp.eq.s32.totalorder %s21, 1
      %p60 = por %p58, %p59
      %p61 = scmp.ne.s32.totalorder %s52, %s53
      %p62 = scmp.eq.s32.totalorder %s21, 0
      %p63 = por %p61, %p62
      %p64 = scmp.ne.s32.totalorder %s52, %s53
      %p65 = scmp.eq.s32.totalorder %s22, 1
      %p66 = por %p64, %p65
      %p68 = scmp.ne.s32.totalorder %s53, %s67
      %p69 = scmp.eq.s32.totalorder %s22, 0
      %p70 = por %p68, %p69
      %s72 = sadd.s32 %s71, 1
      %p75 = scmp.eq.s32.totalorder %s16, 1
      %p76 = scmp.ne.s32.totalorder %s71, %s73
      %p77 = scmp.eq.s32.totalorder %s16, 0
      %p78 = por %p76, %p77
      %p79 = scmp.ne.s32.totalorder %s71, %s73
      %p80 = scmp.eq.s32.totalorder %s21, 1
      %p81 = por %p79, %p80
      %p82 = scmp.ne.s32.totalorder %s73, %s74
      %p83 = scmp.eq.s32.totalorder %s21, 0
      %p84 = por %p82, %p83
      %p85 = scmp.ne.s32.totalorder %s73, %s74
      %p86 = scmp.eq.s32.totalorder %s22, 1
      %p87 = por %p85, %p86
      %p89 = scmp.ne.s32.totalorder %s74, %s88
      %p90 = scmp.eq.s32.totalorder %s22, 0
      %p91 = por %p89, %p90
      %s92 = ssub.s32 %s16, %s23
      %p93 = scmp.eq.s32.totalorder %s92, 0
      %s95 = sadd.s32 %s94, 1
      %s96 = scalar_select %p93, %s94, %s95
      %p99 = pneg %p93
      %p100 = scmp.eq.s32.totalorder %s16, 1
      %p101 = por %p99, %p100
      %p102 = scmp.ne.s32.totalorder %s94, %s97
      %p103 = scmp.eq.s32.totalorder %s16, 0
      %p104 = por %p102, %p103
      %p105 = scmp.ne.s32.totalorder %s94, %s97
      %p106 = scmp.eq.s32.totalorder %s21, 1
      %p107 = por %p105, %p106
      %p108 = scmp.ne.s32.totalorder %s97, %s98
      %p109 = scmp.eq.s32.totalorder %s21, 0
      %p110 = por %p108, %p109
      %p111 = scmp.ne.s32.totalorder %s97, %s98
      %p112 = scmp.eq.s32.totalorder %s22, 1
      %p113 = por %p111, %p112
      %p115 = scmp.ne.s32.totalorder %s98, %s114
      %p116 = scmp.eq.s32.totalorder %s22, 0
      %p117 = por %p115, %p116
      %p118 = scmp.le.s32.totalorder 1, %s16
      %p119 = scmp.lt.s32.totalorder %s16, 3
      %p120 = pnand %p118, %p119
      %p121 = pneg %p120
      // Predicated region
      $region9: #{tpu_custom_call.1} parent=5 // pred_check
        _
      $region10: #{tpu_custom_call.1} parent=5 // pred_check_branch
        %123 = sbr.rel (%p120) target = $region12
      $region11: #{tpu_custom_call.1} parent=5 // pred_region
        %s124 = ssub.s32 %s16, 1
        // Predicated region
        $region13: #{tpu_custom_call.1} parent=11 // pred_check
          %p125 = pneg %p63
        $region14: #{tpu_custom_call.1} parent=11 // pred_check_branch
          %127 = sbr.rel (%p125) target = $region16
        $region15: #{tpu_custom_call.1} parent=11 // pred_region
          %129 = vsyncadd [#allocation6], 0
          %s131 = sshll.u32 %s1, 4
          %s132 = int_to_ptr.hbm [resolvable:$true] %s131
          %s133 = sshll.u32 [#allocation5], 4
          %s134 = int_to_ptr.vmem [resolvable:$true] %s133
          %136 = dma.hbm_to_vmem [thread:$0]  %s132, 16, %s134, [#allocation6]
        $region16: #{tpu_custom_call.1} parent=11 // pred_fallthru
          _
        // Predicated region
        $region17: #{tpu_custom_call.1} parent=11 // pred_check
          %p137 = pneg %p84
        $region18: #{tpu_custom_call.1} parent=11 // pred_check_branch
          %139 = sbr.rel (%p137) target = $region20
        $region19: #{tpu_custom_call.1} parent=11 // pred_region
          _
        $region20: #{tpu_custom_call.1} parent=11 // pred_fallthru
          _
      $region12: #{tpu_custom_call.1} parent=5 // pred_fallthru
        _
      %p140 = scmp.lt.s32.totalorder %s16, 2
      // Predicated region
      $region21: #{tpu_custom_call.1} parent=5 // pred_check
        %p141 = pneg %p140
      $region22: #{tpu_custom_call.1} parent=5 // pred_check_branch
        %143 = sbr.rel (%p141) target = $region24
      $region23: #{tpu_custom_call.1} parent=5 // pred_region
        // Predicated region
        $region25: #{tpu_custom_call.1} parent=23 // pred_check
          %p144 = pneg %p36
        $region26: #{tpu_custom_call.1} parent=23 // pred_check_branch
          %146 = sbr.rel (%p144) target = $region28
        $region27: #{tpu_custom_call.1} parent=23 // pred_region
          %s147 = sand.u32 %s26, 1
          %s148 = scalar_lea.sflag [#allocation3], %s147
          %s149 = sand.u32 %s26, 1
          %s150 = smul.addr %s149, 8
          %s151 = scalar_lea.vmem [#allocation2], %s150
          %153 = vsyncadd %s148, 0
          %s154 = smul.addr %s16, 8
          %s155 = scalar_lea.hbm %s0, %s154
          %s157 = sshll.u32 %s155, 4
          %s158 = int_to_ptr.hbm [resolvable:$true] %s157
          %s159 = sshll.u32 %s151, 4
          %s160 = int_to_ptr.vmem [resolvable:$true] %s159
          %162 = dma.hbm_to_vmem [thread:$0]  %s158, 128, %s160, %s148
        $region28: #{tpu_custom_call.1} parent=23 // pred_fallthru
          _
      $region24: #{tpu_custom_call.1} parent=5 // pred_fallthru
        _
      %p163 = scmp.le.s32.totalorder 1, %s16
      %p164 = scmp.lt.s32.totalorder %s16, 3
      %p165 = pnand %p163, %p164
      %p166 = pneg %p165
      // Predicated region
      $region29: #{tpu_custom_call.1} parent=5 // pred_check
        _
      $region30: #{tpu_custom_call.1} parent=5 // pred_check_branch
        %168 = sbr.rel (%p165) target = $region32
      $region31: #{tpu_custom_call.1} parent=5 // pred_region
        %s169 = ssub.s32 %s16, 1
        %s170 = sand.u32 %s29, 1
        %s171 = scalar_lea.sflag [#allocation3], %s170
        %s172 = sand.u32 %s29, 1
        %s173 = smul.addr %s172, 8
        %s174 = scalar_lea.vmem [#allocation2], %s173
        // Predicated region
        $region33: #{tpu_custom_call.1} parent=31 // pred_check
          %p175 = pneg %p42
        $region34: #{tpu_custom_call.1} parent=31 // pred_check_branch
          %177 = sbr.rel (%p175) target = $region36
        $region35: #{tpu_custom_call.1} parent=31 // pred_region
          %179 = dma.done %s171, 128
        $region36: #{tpu_custom_call.1} parent=31 // pred_fallthru
          _
        // Predicated region
        $region37: #{tpu_custom_call.1} parent=31 // pred_check
          %p180 = pneg %p63
        $region38: #{tpu_custom_call.1} parent=31 // pred_check_branch
          %182 = sbr.rel (%p180) target = $region40
        $region39: #{tpu_custom_call.1} parent=31 // pred_region
          %184 = dma.done [#allocation6], 16
        $region40: #{tpu_custom_call.1} parent=31 // pred_fallthru
          _
        %s185 = sand.u32 %s29, 1
        %s186 = scalar_lea.sflag [#allocation3], %s185
        %s187 = sand.u32 %s29, 1
        %s188 = smul.addr %s187, 8
        %s189 = scalar_lea.vmem [#allocation2], %s188
        %p190 = pneg %p42
        %p191 = pneg %p39
        %p192 = pneg %p63
        %p193 = pneg %p60
        %p194 = pneg %p84
        %p195 = pneg %p81
        %p196 = pneg %p110
        %p197 = pneg %p107
        %s198 = sand.u32 %s97, 1
        %s199 = scalar_lea.sflag [#allocation4], %s198
        %s200 = sand.u32 %s97, 1
        %s201 = smul.addr %s200, 8
        %s202 = scalar_lea.vmem [#allocation7], %s201
        %v203 = vld [vmem:[%s174] sm:$0xff]
        %204 = vadd.xlane.f32.xlu0 %v203
        %v205 = vpop.xlane.xlu0 %204
        %v206 = vrcp.pop 128.0
        %v207 = vmul.f32 128.0, %v206
        %v208 = vsub.f32 1.0, %v207
        %v209 = vmul.f32 %v206, %v208
        %v210 = vadd.f32 %v206, %v209
        %vm211 = vweird.f32 %v206
        %v212 = vsel %vm211, %v206, %v210
        %v213 = vmul.f32 %v205, %v212
        %v214 = vsub.f32 %v203, %v213
        %v215 = vmul.f32 %v214, %v214
        %216 = vadd.xlane.f32.xlu0 %v215
        %v217 = vpop.xlane.xlu0 %216
        %v218 = vmul.f32 %v217, %v212
        %v219 = vadd.f32 %v218, 1e-12
        %v220 = vrsqrt.pop %v219
        %v221 = vmul.f32 %v220, %v219
        %v222 = vmul.f32 %v221, %v220
        %v223 = vmul.f32 0.5, %v222
        %v224 = vsub.f32 1.5, %v223
        %v225 = vmul.f32 %v220, %v224
        %vm226 = vweird.f32 %v219
        %vm227 = vweird.f32 %v220
        %vm228 = vmor %vm226, %vm227
        %v229 = vsel %vm228, %v220, %v225
        %v230 = vmul.f32 %v214, %v229
        %v231 = vld [vmem:[#allocation5] sm:$0x1]
        %v233 = vperm.slane %v231, 0
        %v235 = vmul.f32 %v230, %v233
        %v236 = vld [vmem:[%s2] sm:$0x1]
        %v238 = vperm.slane %v236, 0
        %v240 = vadd.f32 %v235, %v238
        %241 = vst [vmem:[%s202] sm:$0xff] %v240
        %s242 = sand.u32 %s97, 1
        %s243 = scalar_lea.sflag [#allocation4], %s242
        %s244 = sand.u32 %s97, 1
        %s245 = smul.addr %s244, 8
        %s246 = scalar_lea.vmem [#allocation7], %s245
        // Predicated region
        $region41: #{tpu_custom_call.1} parent=31 // pred_check
          %p247 = pneg %p107
        $region42: #{tpu_custom_call.1} parent=31 // pred_check_branch
          %249 = sbr.rel (%p247) target = $region44
        $region43: #{tpu_custom_call.1} parent=31 // pred_region
          %251 = vsyncadd %s243, 0
          %s252 = smul.addr %s21, 8
          %s253 = scalar_lea.hbm %s3, %s252
          %s255 = sshll.u32 %s246, 4
          %s256 = int_to_ptr.vmem [resolvable:$true] %s255
          %s257 = sshll.u32 %s253, 4
          %s258 = int_to_ptr.hbm [resolvable:$true] %s257
          %260 = dma.vmem_to_hbm [thread:$0]  %s256, 128, %s258, %s243
        $region44: #{tpu_custom_call.1} parent=31 // pred_fallthru
          _
      $region32: #{tpu_custom_call.1} parent=5 // pred_fallthru
        _
      %p261 = scmp.le.s32.totalorder 2, %s16
      // Predicated region
      $region45: #{tpu_custom_call.1} parent=5 // pred_check
        %p262 = pneg %p261
      $region46: #{tpu_custom_call.1} parent=5 // pred_check_branch
        %264 = sbr.rel (%p262) target = $region48
      $region47: #{tpu_custom_call.1} parent=5 // pred_region
        %s265 = ssub.s32 %s16, 2
        // Predicated region
        $region49: #{tpu_custom_call.1} parent=47 // pred_check
          %p266 = pneg %p113
        $region50: #{tpu_custom_call.1} parent=47 // pred_check_branch
          %268 = sbr.rel (%p266) target = $region52
        $region51: #{tpu_custom_call.1} parent=47 // pred_region
          %s269 = sand.u32 %s98, 1
          %s270 = scalar_lea.sflag [#allocation4], %s269
          %s271 = sand.u32 %s98, 1
          %s272 = smul.addr %s271, 8
          %s273 = scalar_lea.vmem [#allocation7], %s272
          %275 = dma.done %s270, 128
        $region52: #{tpu_custom_call.1} parent=47 // pred_fallthru
          _
      $region48: #{tpu_custom_call.1} parent=5 // pred_fallthru
        _
    $region6: #{tpu_custom_call.1} parent=1 // loop_footer
      %s20 = sadd.s32 1, %s16
    $region7: #{tpu_custom_call.1} parent=1 // loop_footer_branch
      %15 = sbr.rel target = $region3
    $region8: #{tpu_custom_call.1} parent=1 // loop_exit
      _
    %276 = vsyncpa [#allocation3], 1
    %s277 = scalar_lea.sflag [#allocation3], 1
    %278 = vsyncpa %s277, 1
    %279 = vsyncpa [#allocation6], 1
    %280 = vsyncpa [#allocation4], 1
    %s281 = scalar_lea.sflag [#allocation4], 1
    %282 = vsyncpa %s281, 1

</llo_original>
